<compile_context>
chip_gen: v5e
topology: v5e:2x2
jax: 0.10.0
libtpu: 0.0.40
codegen_flags: <defaults>
</compile_context>

<pallas_src>
import functools

import jax
import jax.numpy as jnp
from jax.experimental import pallas as pl
from jax.experimental.pallas import tpu as pltpu


def _special_loss_kernel(n_total, w_ref, y_ref, x1_ref, x2_ref, x3_ref,
                         out_ref, acc_ref):
    # w_ref:   SMEM (3,)          f32   -> [w1, w2, w3 / N]
    # y_ref:   VMEM (tile_n,1)    int32 -> class indices (current row tile)
    # x*_ref:  VMEM (tile_n,C)    native dtype (current row tile)
    # out_ref: VMEM (1,8,128)     f32   -> per-shard partial loss (finalize only)
    # acc_ref: VMEM (tile_n,1)    f32   -> fused per-row partial accumulator
    c = pl.program_id(0)            # shard (TensorCore on v7x)
    i = pl.program_id(1)            # streaming step within the shard
    inner = pl.num_programs(1)

    @pl.when(i == 0)
    def _init():
        acc_ref[...] = jnp.zeros_like(acc_ref)

    x1 = x1_ref[...].astype(jnp.float32)
    tn, C = x1.shape

    # Row-validity mask based on the *logical* step position, so both the
    # padded tail rows and the clamped duplicate last shard step contribute 0.
    row = jax.lax.broadcasted_iota(jnp.int32, (tn, 1), 0) + (c * inner + i) * tn
    valid = row < n_total                                         # (tn,1) bool

    # ---- cosine-similarity terms (ATen eps semantics: clamp each norm) ----
    eps2 = jnp.float32(1e-16)          # = eps^2 with eps = 1e-8
    n1 = jnp.sum(x1 * x1, axis=-1, keepdims=True)                 # (tn,1)
    inv1 = jax.lax.rsqrt(jnp.maximum(n1, eps2))                   # 1/max(||x1||,eps)

    def cos_rows(b_ref):
        b = b_ref[...].astype(jnp.float32)   # upcast consumed immediately
        dot = jnp.sum(x1 * b, axis=-1, keepdims=True)             # (tn,1)
        nb = jnp.sum(b * b, axis=-1, keepdims=True)               # (tn,1)
        return dot * inv1 * jax.lax.rsqrt(jnp.maximum(nb, eps2))

    cos12 = cos_rows(x2_ref)
    cos13 = cos_rows(x3_ref)

    # ---- cross-entropy: per-row (lse - target_logit); no (N,C) logp temp ----
    m = jnp.max(x1, axis=-1, keepdims=True)                       # (tn,1)
    lse = jnp.log(jnp.sum(jnp.exp(x1 - m), axis=-1, keepdims=True)) + m
    col = jax.lax.broadcasted_iota(jnp.int32, (tn, C), 1)
    onehot = (col == y_ref[...]).astype(jnp.float32)              # (tn,C)
    tgt = jnp.sum(x1 * onehot, axis=-1, keepdims=True)            # (tn,1)

    # ---- single fused per-row partial, one vector accumulate per step ----
    partial = w_ref[0] * cos12 - w_ref[1] * cos13 + w_ref[2] * (lse - tgt)
    acc_ref[...] += jnp.where(valid, partial, 0.0)

    @pl.when(i == inner - 1)
    def _finalize():
        # TODO(synk): PyTorch CE default ignore_index=-100 (divide by count of
        # non-ignored targets) is not reproduced; all targets assumed valid.
        total = jnp.sum(acc_ref[...])
        out_ref[...] = jnp.full(out_ref.shape, total, dtype=jnp.float32)


def _pick_tile_n(n, c, itemsize, stream_budget_bytes=10 * 1024 * 1024):
    """Largest dtype-packed row tile whose streamed inputs *plus* the in-kernel
    f32 working set fit a conservative VMEM budget (safe for v7x's 64 MiB)."""
    pack = max(8, 32 // itemsize)                 # 8 f32 / 16 bf16 / 32 int8
    # 3 inputs x 2 pipeline buffers (native dtype) + ~6 f32 planes of temporaries
    per_row = 3 * 2 * c * itemsize + 6 * c * 4 + 2 * 4
    t = stream_budget_bytes // max(1, per_row)
    t = min(t, 1024)                              # HBM roofline flat past ~512-1024
    n_pad = ((n + pack - 1) // pack) * pack
    t = min(t, n_pad)
    t = max(pack, (t // pack) * pack)
    return int(t)


def special_loss(x1, x2, x3, y1, y2=None, y3=None,
                 w1=1.0, w2=1.0, w3=1.0, tile_n=None, num_cores=2):
    """Pallas implementation of SpecialLoss.forward. y2, y3 are unused."""
    N, C = x1.shape
    itemsize = jnp.dtype(x1.dtype).itemsize
    if tile_n is None:
        tile_n = _pick_tile_n(N, C, itemsize)

    nblocks = pl.cdiv(N, tile_n)
    ncores = max(1, min(num_cores, nblocks))      # leading "parallel" shard axis
    inner = pl.cdiv(nblocks, ncores)
    grid = (ncores, inner)
    last_block = nblocks - 1

    def row_map(c, i):
        # Clamp so the DMA of an overhanging shard step stays in bounds; its
        # rows are zeroed in-kernel via the logical-index mask.
        return (jnp.minimum(c * inner + i, last_block), 0)

    w = jnp.array([w1, w2, w3 / N], dtype=jnp.float32)
    y = y1.astype(jnp.int32).reshape(N, 1)

    kernel = functools.partial(_special_loss_kernel, N)

    cost = pl.CostEstimate(
        flops=int(16 * N * C),
        transcendentals=int(N * C + 3 * N),
        bytes_accessed=int(3 * N * C * itemsize + 4 * N + 16),
    )

    out = pl.pallas_call(
        kernel,
        out_shape=jax.ShapeDtypeStruct((ncores, 8, 128), jnp.float32),
        grid=grid,
        in_specs=[
            pl.BlockSpec(memory_space=pltpu.MemorySpace.SMEM),   # [w1, w2, w3/N]
            pl.BlockSpec((tile_n, 1), row_map),                  # y1
            pl.BlockSpec((tile_n, C), row_map),                  # x1
            pl.BlockSpec((tile_n, C), row_map),                  # x2
            pl.BlockSpec((tile_n, C), row_map),                  # x3
        ],
        out_specs=pl.BlockSpec((1, 8, 128), lambda c, i: (c, 0, 0)),
        scratch_shapes=[pltpu.VMEM((tile_n, 1), jnp.float32)],
        compiler_params=pltpu.CompilerParams(
            dimension_semantics=("parallel", "arbitrary"),
            vmem_limit_bytes=48 * 1024 * 1024,
        ),
        cost_estimate=cost,
    )(w, y, x1, x2, x3)

    # Combine the per-shard partial losses (tiny jnp op in the wrapper).
    return jnp.sum(out[:, 0, 0])


if __name__ == "__main__":
    key = jax.random.PRNGKey(0)
    k1, k2, k3, k4, k5, k6 = jax.random.split(key, 6)
    N, C = 20, 32  # batch, num_classes (N not a tile multiple -> tail masking)
    x1 = jax.random.normal(k1, (N, C), dtype=jnp.float32)
    x2 = jax.random.normal(k2, (N, C), dtype=jnp.float32)
    x3 = jax.random.normal(k3, (N, C), dtype=jnp.float32)
    y1 = jax.random.randint(k4, (N,), 0, C, dtype=jnp.int32)
    y2 = jax.random.randint(k5, (N,), 0, C, dtype=jnp.int32)  # unused (as in torch)
    y3 = jax.random.randint(k6, (N,), 0, C, dtype=jnp.int32)  # unused (as in torch)

    # Parameters w1, w2, w3 deterministically 1.0 (as in __init__).
    # tile_n=8 exercises the 2-shard grid, the clamped duplicate tail step,
    # the VMEM accumulator, and the tail-row mask.
    loss = special_loss(x1, x2, x3, y1, y2, y3, w1=1.0, w2=1.0, w3=1.0, tile_n=8)
    jax.block_until_ready(loss)

    # Pure-JAX reference (torch semantics: clamp each norm to eps=1e-8).
    def ref(x1, x2, x3, y1):
        eps = jnp.float32(1e-8)
        def cs(a, b):
            dot = jnp.sum(a * b, -1)
            na = jnp.maximum(jnp.sqrt(jnp.sum(a * a, -1)), eps)
            nb = jnp.maximum(jnp.sqrt(jnp.sum(b * b, -1)), eps)
            return jnp.sum(dot / (na * nb))
        logp = jax.nn.log_softmax(x1, axis=-1)
        ce = -jnp.mean(jnp.take_along_axis(logp, y1[:, None], axis=1))
        return cs(x1, x2) - cs(x1, x3) + ce

    assert jnp.allclose(loss, ref(x1, x2, x3, y1), rtol=1e-5, atol=1e-5)
    print("KERNEL_OK")
</pallas_src>

<mosaic_0001>
module attributes {stable_mosaic.version = 11 : i64} {
  func.func @_special_loss_kernel(%arg0: i32, %arg1: i32, %arg2: memref<3xf32, #tpu.memory_space<smem>>, %arg3: memref<8x1xi32, #tpu.memory_space<vmem>>, %arg4: memref<8x32xf32, #tpu.memory_space<vmem>>, %arg5: memref<8x32xf32, #tpu.memory_space<vmem>>, %arg6: memref<8x32xf32, #tpu.memory_space<vmem>>, %arg7: memref<1x8x128xf32, #tpu.memory_space<vmem>>, %arg8: memref<8x1xf32, #tpu.memory_space<vmem>>) attributes {dimension_semantics = [#tpu.dimension_semantics<parallel>, #tpu.dimension_semantics<arbitrary>], iteration_bounds = array<i64: 2, 2>, scalar_prefetch = 0 : i64, scratch_operands = 1 : i64, tpu.core_type = #tpu.core_type<tc>, window_params = [{transform_indices = @transform_0, window_bounds = array<i64: 3>}, {transform_indices = @transform_1, window_bounds = array<i64: 8, 1>}, {transform_indices = @transform_2, window_bounds = array<i64: 8, 32>}, {transform_indices = @transform_3, window_bounds = array<i64: 8, 32>}, {transform_indices = @transform_4, window_bounds = array<i64: 8, 32>}, {transform_indices = @transform_5, window_bounds = array<i64: 1, 8, 128>}]} {
    %c0_i32 = arith.constant 0 : i32
    %0 = arith.cmpi eq, %arg1, %c0_i32 : i32
    %1 = arith.extui %0 : i1 to i32
    %c0_i32_0 = arith.constant 0 : i32
    %2 = arith.cmpi ne, %1, %c0_i32_0 : i32
    scf.if %2 {
      %cst_25 = arith.constant 0.000000e+00 : f32
      %80 = vector.broadcast %cst_25 : f32 to vector<8x1xf32>
      %c0_26 = arith.constant 0 : index
      %c0_27 = arith.constant 0 : index
      %81 = vector.load %arg8[%c0_26, %c0_27] : memref<8x1xf32, #tpu.memory_space<vmem>>, vector<8x1xf32>
      tpu.vector_store %arg8[%c0_26, %c0_27], %80 {strides = array<i32>} : memref<8x1xf32, #tpu.memory_space<vmem>>, vector<8x1xf32>,
    } else {
    }
    %c0 = arith.constant 0 : index
    %c0_1 = arith.constant 0 : index
    %3 = vector.load %arg4[%c0, %c0_1] : memref<8x32xf32, #tpu.memory_space<vmem>>, vector<8x32xf32>
    %4 = tpu.iota {dimensions = array<i32: 0>} : vector<8x1xi32>
    %c2_i32 = arith.constant 2 : i32
    %5 = arith.muli %arg0, %c2_i32 : i32
    %6 = arith.addi %5, %arg1 : i32
    %c8_i32 = arith.constant 8 : i32
    %7 = arith.muli %6, %c8_i32 : i32
    %8 = vector.broadcast %7 : i32 to vector<8x1xi32>
    %9 = arith.addi %4, %8 : vector<8x1xi32>
    %c20_i32 = arith.constant 20 : i32
    %10 = vector.broadcast %c20_i32 : i32 to vector<8x1xi32>
    %11 = arith.cmpi slt, %9, %10 : vector<8x1xi32>
    %12 = arith.mulf %3, %3 : vector<8x32xf32>
    %cst = arith.constant dense<0.000000e+00> : vector<8xf32>
    %13 = vector.multi_reduction <add>, %12, %cst [1] : vector<8x32xf32> to vector<8xf32>
    %14 = vector.shape_cast %13 : vector<8xf32> to vector<8x1xf32>
    %cst_2 = arith.constant 1.000000e-16 : f32
    %15 = vector.broadcast %cst_2 : f32 to vector<8x1xf32>
    %16 = arith.maximumf %14, %15 : vector<8x1xf32>
    %17 = math.rsqrt %16 : vector<8x1xf32>
    %c0_3 = arith.constant 0 : index
    %c0_4 = arith.constant 0 : index
    %18 = vector.load %arg5[%c0_3, %c0_4] : memref<8x32xf32, #tpu.memory_space<vmem>>, vector<8x32xf32>
    %19 = arith.mulf %3, %18 : vector<8x32xf32>
    %cst_5 = arith.constant dense<0.000000e+00> : vector<8xf32>
    %20 = vector.multi_reduction <add>, %19, %cst_5 [1] : vector<8x32xf32> to vector<8xf32>
    %21 = vector.shape_cast %20 : vector<8xf32> to vector<8x1xf32>
    %22 = arith.mulf %18, %18 : vector<8x32xf32>
    %cst_6 = arith.constant dense<0.000000e+00> : vector<8xf32>
    %23 = vector.multi_reduction <add>, %22, %cst_6 [1] : vector<8x32xf32> to vector<8xf32>
    %24 = vector.shape_cast %23 : vector<8xf32> to vector<8x1xf32>
    %25 = arith.mulf %21, %17 : vector<8x1xf32>
    %cst_7 = arith.constant 1.000000e-16 : f32
    %26 = vector.broadcast %cst_7 : f32 to vector<8x1xf32>
    %27 = arith.maximumf %24, %26 : vector<8x1xf32>
    %28 = math.rsqrt %27 : vector<8x1xf32>
    %29 = arith.mulf %25, %28 : vector<8x1xf32>
    %c0_8 = arith.constant 0 : index
    %c0_9 = arith.constant 0 : index
    %30 = vector.load %arg6[%c0_8, %c0_9] : memref<8x32xf32, #tpu.memory_space<vmem>>, vector<8x32xf32>
    %31 = arith.mulf %3, %30 : vector<8x32xf32>
    %cst_10 = arith.constant dense<0.000000e+00> : vector<8xf32>
    %32 = vector.multi_reduction <add>, %31, %cst_10 [1] : vector<8x32xf32> to vector<8xf32>
    %33 = vector.shape_cast %32 : vector<8xf32> to vector<8x1xf32>
    %34 = arith.mulf %30, %30 : vector<8x32xf32>
    %cst_11 = arith.constant dense<0.000000e+00> : vector<8xf32>
    %35 = vector.multi_reduction <add>, %34, %cst_11 [1] : vector<8x32xf32> to vector<8xf32>
    %36 = vector.shape_cast %35 : vector<8xf32> to vector<8x1xf32>
    %37 = arith.mulf %33, %17 : vector<8x1xf32>
    %cst_12 = arith.constant 1.000000e-16 : f32
    %38 = vector.broadcast %cst_12 : f32 to vector<8x1xf32>
    %39 = arith.maximumf %36, %38 : vector<8x1xf32>
    %40 = math.rsqrt %39 : vector<8x1xf32>
    %41 = arith.mulf %37, %40 : vector<8x1xf32>
    %cst_13 = arith.constant dense<0xFF800000> : vector<8xf32>
    %42 = vector.multi_reduction <maximumf>, %3, %cst_13 [1] : vector<8x32xf32> to vector<8xf32>
    %43 = vector.shape_cast %42 : vector<8xf32> to vector<8x1xf32>
    %44 = vector.broadcast %43 : vector<8x1xf32> to vector<8x32xf32>
    %45 = arith.subf %3, %44 : vector<8x32xf32>
    %46 = math.exp %45 : vector<8x32xf32>
    %cst_14 = arith.constant dense<0.000000e+00> : vector<8xf32>
    %47 = vector.multi_reduction <add>, %46, %cst_14 [1] : vector<8x32xf32> to vector<8xf32>
    %48 = vector.shape_cast %47 : vector<8xf32> to vector<8x1xf32>
    %49 = math.log %48 : vector<8x1xf32>
    %50 = arith.addf %49, %43 : vector<8x1xf32>
    %51 = tpu.iota {dimensions = array<i32: 1>} : vector<8x32xi32>
    %c0_15 = arith.constant 0 : index
    %c0_16 = arith.constant 0 : index
    %52 = vector.load %arg3[%c0_15, %c0_16] : memref<8x1xi32, #tpu.memory_space<vmem>>, vector<8x1xi32>
    %53 = vector.broadcast %52 : vector<8x1xi32> to vector<8x32xi32>
    %54 = arith.cmpi eq, %51, %53 : vector<8x32xi32>
    %55 = arith.extui %54 : vector<8x32xi1> to vector<8x32xi32>
    %56 = arith.sitofp %55 : vector<8x32xi32> to vector<8x32xf32>
    %57 = arith.mulf %3, %56 : vector<8x32xf32>
    %cst_17 = arith.constant dense<0.000000e+00> : vector<8xf32>
    %58 = vector.multi_reduction <add>, %57, %cst_17 [1] : vector<8x32xf32> to vector<8xf32>
    %59 = vector.shape_cast %58 : vector<8xf32> to vector<8x1xf32>
    %c0_18 = arith.constant 0 : index
    %60 = memref.load %arg2[%c0_18] : memref<3xf32, #tpu.memory_space<smem>>
    %61 = vector.broadcast %60 : f32 to vector<8x1xf32>
    %62 = arith.mulf %61, %29 : vector<8x1xf32>
    %c1 = arith.constant 1 : index
    %63 = memref.load %arg2[%c1] : memref<3xf32, #tpu.memory_space<smem>>
    %64 = vector.broadcast %63 : f32 to vector<8x1xf32>
    %65 = arith.mulf %64, %41 : vector<8x1xf32>
    %66 = arith.subf %62, %65 : vector<8x1xf32>
    %c2 = arith.constant 2 : index
    %67 = memref.load %arg2[%c2] : memref<3xf32, #tpu.memory_space<smem>>
    %68 = arith.subf %50, %59 : vector<8x1xf32>
    %69 = vector.broadcast %67 : f32 to vector<8x1xf32>
    %70 = arith.mulf %69, %68 : vector<8x1xf32>
    %71 = arith.addf %66, %70 : vector<8x1xf32>
    %c0_19 = arith.constant 0 : index
    %c0_20 = arith.constant 0 : index
    %72 = vector.load %arg8[%c0_19, %c0_20] : memref<8x1xf32, #tpu.memory_space<vmem>>, vector<8x1xf32>
    %cst_21 = arith.constant 0.000000e+00 : f32
    %73 = vector.broadcast %cst_21 : f32 to vector<8x1xf32>
    %74 = arith.select %11, %71, %73 : vector<8x1xi1>, vector<8x1xf32>
    %75 = arith.addf %72, %74 : vector<8x1xf32>
    %c0_22 = arith.constant 0 : index
    %c0_23 = arith.constant 0 : index
    %76 = vector.load %arg8[%c0_22, %c0_23] : memref<8x1xf32, #tpu.memory_space<vmem>>, vector<8x1xf32>
    tpu.vector_store %arg8[%c0_22, %c0_23], %75 {strides = array<i32>} : memref<8x1xf32, #tpu.memory_space<vmem>>, vector<8x1xf32>,
    %c1_i32 = arith.constant 1 : i32
    %77 = arith.cmpi eq, %arg1, %c1_i32 : i32
    %78 = arith.extui %77 : i1 to i32
    %c0_i32_24 = arith.constant 0 : i32
    %79 = arith.cmpi ne, %78, %c0_i32_24 : i32
    scf.if %79 {
      %c0_25 = arith.constant 0 : index
      %c0_26 = arith.constant 0 : index
      %80 = vector.load %arg8[%c0_25, %c0_26] : memref<8x1xf32, #tpu.memory_space<vmem>>, vector<8x1xf32>
      %81 = vector.shape_cast %80 : vector<8x1xf32> to vector<1x8x1xf32>
      %cst_27 = arith.constant dense<0.000000e+00> : vector<1xf32>
      %82 = vector.multi_reduction <add>, %81, %cst_27 [1, 2] : vector<1x8x1xf32> to vector<1xf32>
      %83 = vector.shape_cast %82 : vector<1xf32> to vector<1x1x1xf32>
      %84 = vector.extract %83[0, 0, 0] : f32 from vector<1x1x1xf32>
      %85 = vector.broadcast %84 : f32 to vector<1x8x128xf32>
      %c0_28 = arith.constant 0 : index
      %c0_29 = arith.constant 0 : index
      %c0_30 = arith.constant 0 : index
      %86 = vector.load %arg7[%c0_28, %c0_29, %c0_30] : memref<1x8x128xf32, #tpu.memory_space<vmem>>, vector<1x8x128xf32>
      tpu.vector_store %arg7[%c0_28, %c0_29, %c0_30], %85 {strides = array<i32>} : memref<1x8x128xf32, #tpu.memory_space<vmem>>, vector<1x8x128xf32>,
    } else {
    }
    return
  }
  func.func @transform_0(%arg0: i32, %arg1: i32) -> i32 {
    %c0_i32 = arith.constant 0 : i32
    %c0_i32_0 = arith.constant 0 : i32
    return %c0_i32 : i32
  }
  func.func @transform_1(%arg0: i32, %arg1: i32) -> (i32, i32) {
    %c2_i32 = arith.constant 2 : i32
    %0 = arith.muli %arg0, %c2_i32 : i32
    %1 = arith.addi %0, %arg1 : i32
    %c2_i32_0 = arith.constant 2 : i32
    %2 = arith.minsi %1, %c2_i32_0 : i32
    %c0_i32 = arith.constant 0 : i32
    %c0_i32_1 = arith.constant 0 : i32
    return %2, %c0_i32 : i32, i32
  }
  func.func @transform_2(%arg0: i32, %arg1: i32) -> (i32, i32) {
    %c2_i32 = arith.constant 2 : i32
    %0 = arith.muli %arg0, %c2_i32 : i32
    %1 = arith.addi %0, %arg1 : i32
    %c2_i32_0 = arith.constant 2 : i32
    %2 = arith.minsi %1, %c2_i32_0 : i32
    %c0_i32 = arith.constant 0 : i32
    %c0_i32_1 = arith.constant 0 : i32
    return %2, %c0_i32 : i32, i32
  }
  func.func @transform_3(%arg0: i32, %arg1: i32) -> (i32, i32) {
    %c2_i32 = arith.constant 2 : i32
    %0 = arith.muli %arg0, %c2_i32 : i32
    %1 = arith.addi %0, %arg1 : i32
    %c2_i32_0 = arith.constant 2 : i32
    %2 = arith.minsi %1, %c2_i32_0 : i32
    %c0_i32 = arith.constant 0 : i32
    %c0_i32_1 = arith.constant 0 : i32
    return %2, %c0_i32 : i32, i32
  }
  func.func @transform_4(%arg0: i32, %arg1: i32) -> (i32, i32) {
    %c2_i32 = arith.constant 2 : i32
    %0 = arith.muli %arg0, %c2_i32 : i32
    %1 = arith.addi %0, %arg1 : i32
    %c2_i32_0 = arith.constant 2 : i32
    %2 = arith.minsi %1, %c2_i32_0 : i32
    %c0_i32 = arith.constant 0 : i32
    %c0_i32_1 = arith.constant 0 : i32
    return %2, %c0_i32 : i32, i32
  }
  func.func @transform_5(%arg0: i32, %arg1: i32) -> (i32, i32, i32) {
    %c0_i32 = arith.constant 0 : i32
    %c0_i32_0 = arith.constant 0 : i32
    %c0_i32_1 = arith.constant 0 : i32
    return %arg0, %c0_i32, %c0_i32_0 : i32, i32, i32
  }
}

</mosaic_0001>

<llo_original>
// kernel: tpu_custom_call.1
$region0: #{tpu_custom_call.1}
  #allocation0 [shape = 'u32[]', space=smem, size = 0x4, offset = 0x4, fixed_abs, tag = 'smem constant byte address 0x4 - core index']
  #allocation1 [shape = 'u32[72,128]{1,0:T(1,128)}', space=vmem, size = 0x9000, scoped, tag = 'internal scratch']
  #allocation2 [shape = 'f32[8,1]{1,0:T(8,128)}', space=vmem, size = 0x1000, scoped, tag = 'scratch operand']
  %s0 = inlined_call_operand.vmem [shape: f32[3], index: 0, kind: input, shape index: {}]
  %s1 = inlined_call_operand.vmem [shape: s32[20,1], index: 1, kind: input, shape index: {}]
  %s2 = inlined_call_operand.vmem [shape: f32[20,32], index: 2, kind: input, shape index: {}]
  %s3 = inlined_call_operand.hbm [shape: f32[20,32], index: 3, kind: input, shape index: {}]
  %s4 = inlined_call_operand.hbm [shape: f32[20,32], index: 4, kind: input, shape index: {}]
  %s5 = inlined_call_operand.hbm [shape: f32[2,8,128], index: 5, kind: output, shape index: {}]
  %s6 = sld [smem:[#allocation0]]
  $region73: #{tpu_custom_call.1} parent=0
    _
  %s8 = ssub.s32 1, %s6
  %s9 = scalar_select 0, %s8, %s6
  $region1: #{tpu_custom_call.1} parent=0
    #allocation3 [shape = 'u8[512]{0}', space=smem, size = 0x200, scoped, tag = 'input window, operand 0, single buffered']
    #allocation4 [shape = 's32[2]{0}', space=sflag, size = 0x8, scoped, tag = 'scoped memory for tpu_custom_call.1']
    #allocation5 [shape = 's32[2]{0}', space=sflag, size = 0x8, scoped, tag = 'scoped memory for tpu_custom_call.1']
    #allocation6 [shape = 's32[2]{0}', space=sflag, size = 0x8, scoped, tag = 'scoped memory for tpu_custom_call.1']
    #allocation7 [shape = 'u8[8192]{0}', space=vmem, size = 0x2000, scoped, tag = 'input window, operand 3']
    #allocation8 [shape = 'u8[8192]{0}', space=vmem, size = 0x2000, scoped, tag = 'input window, operand 4']
    #allocation9 [shape = 's32[2]{0}', space=sflag, size = 0x8, scoped, tag = 'scoped memory for tpu_custom_call.1']
    #allocation10 [shape = 'u8[8192]{0}', space=vmem, size = 0x2000, scoped, tag = 'output window, operand 0']
    %10 = vsyncpa [#allocation6], 0
    %11 = vsyncpa [#allocation4], 0
    %s12 = scalar_lea.sflag [#allocation4], 1
    %13 = vsyncpa %s12, 0
    %14 = vsyncpa [#allocation9], 0
    %s15 = scalar_lea.sflag [#allocation9], 1
    %16 = vsyncpa %s15, 0
    %17 = vsyncpa [#allocation5], 0
    %s18 = scalar_lea.sflag [#allocation5], 1
    %19 = vsyncpa %s18, 0
    loop: start=0, step=1, limit=6
    $region2: #{tpu_custom_call.1} parent=1 // loop_pre_header
      _
    $region3: #{tpu_custom_call.1} parent=1 // loop_header
      %s21 = sphi 0, %s25
      %p22 = scmp.ge.s32.totalorder %s21, 6
      %s28 = sphi 0, %s40
      %s29 = sphi 0, %s36
      %s30 = sphi 0, %s28
      %s31 = sphi 0, %s29
      %s32 = sphi 0, %s30
      %s33 = sphi 0, %s31
      %s41 = sphi 0, %s41
      %s43 = sphi 0, %s41
      %s44 = sphi 0, %s43
      %s58 = sphi 0, %s44
      %s72 = sphi 0, %s74
      %s75 = sphi 0, %s72
      %s76 = sphi 0, %s75
      %s92 = sphi 0, %s76
      %s106 = sphi 0, %s108
      %s109 = sphi 0, %s106
      %s110 = sphi 0, %s109
      %s126 = sphi 0, %s110
      %s140 = sphi 0, %s142
      %s143 = sphi 0, %s140
      %s144 = sphi 0, %s143
      %s160 = sphi 0, %s144
      %s174 = sphi 0, %s176
      %s177 = sphi 0, %s174
      %s178 = sphi 0, %s177
      %s194 = sphi 0, %s178
      %s200 = sphi 0, %s202
      %s203 = sphi 0, %s200
      %s204 = sphi 0, %s203
      %s220 = sphi 0, %s204
    $region4: #{tpu_custom_call.1} parent=1 // loop_header_branch
      %24 = sbr.rel (%p22) target = $region8
    $region5: #{tpu_custom_call.1} parent=1 // loop_body
      %s26 = ssub.s32 %s21, 1
      %s27 = ssub.s32 %s21, 2
      %s34 = sadd.s32 1, %s29
      %p35 = scmp.ge.s32.totalorder %s34, 2
      %s36 = scalar_select %p35, 0, %s34
      %s37 = sadd.s32 1, %s28
      %s38 = scalar_select %p35, %s37, %s28
      %p39 = scmp.ge.s32.totalorder %s38, 2
      %s40 = scalar_select %p39, 0, %s38
      %s42 = sadd.s32 %s41, 1
      %p45 = scmp.eq.s32.totalorder %s21, 3
      %p46 = scmp.ne.s32.totalorder %s41, %s43
      %p47 = scmp.eq.s32.totalorder %s21, 0
      %p48 = por %p46, %p47
      %p49 = scmp.ne.s32.totalorder %s41, %s43
      %p50 = scmp.eq.s32.totalorder %s26, 3
      %p51 = por %p49, %p50
      %p52 = scmp.ne.s32.totalorder %s43, %s44
      %p53 = scmp.eq.s32.totalorder %s26, 0
      %p54 = por %p52, %p53
      %p55 = scmp.ne.s32.totalorder %s43, %s44
      %p56 = scmp.eq.s32.totalorder %s27, 3
      %p57 = por %p55, %p56
      %p59 = scmp.ne.s32.totalorder %s44, %s58
      %p60 = scmp.eq.s32.totalorder %s27, 0
      %p61 = por %p59, %p60
      %s62 = smul.u32 %s28, 2
      %s63 = sadd.s32 %s62, %s29
      %p64 = scmp.lt.s32.totalorder %s63, 2
      %s65 = scalar_select %p64, %s63, 2
      %s66 = smul.u32 %s40, 2
      %s67 = sadd.s32 %s66, %s36
      %p68 = scmp.lt.s32.totalorder %s67, 2
      %s69 = scalar_select %p68, %s67, 2
      %s70 = ssub.s32 %s65, %s69
      %p71 = scmp.eq.s32.totalorder %s70, 0
      %s73 = sadd.s32 %s72, 1
      %s74 = scalar_select %p71, %s72, %s73
      %p77 = pneg %p71
      %p78 = scmp.eq.s32.totalorder %s21, 3
      %p79 = por %p77, %p78
      %p80 = scmp.ne.s32.totalorder %s72, %s75
      %p81 = scmp.eq.s32.totalorder %s21, 0
      %p82 = por %p80, %p81
      %p83 = scmp.ne.s32.totalorder %s72, %s75
      %p84 = scmp.eq.s32.totalorder %s26, 3
      %p85 = por %p83, %p84
      %p86 = scmp.ne.s32.totalorder %s75, %s76
      %p87 = scmp.eq.s32.totalorder %s26, 0
      %p88 = por %p86, %p87
      %p89 = scmp.ne.s32.totalorder %s75, %s76
      %p90 = scmp.eq.s32.totalorder %s27, 3
      %p91 = por %p89, %p90
      %p93 = scmp.ne.s32.totalorder %s76, %s92
      %p94 = scmp.eq.s32.totalorder %s27, 0
      %p95 = por %p93, %p94
      %s96 = smul.u32 %s28, 2
      %s97 = sadd.s32 %s96, %s29
      %p98 = scmp.lt.s32.totalorder %s97, 2
      %s99 = scalar_select %p98, %s97, 2
      %s100 = smul.u32 %s40, 2
      %s101 = sadd.s32 %s100, %s36
      %p102 = scmp.lt.s32.totalorder %s101, 2
      %s103 = scalar_select %p102, %s101, 2
      %s104 = ssub.s32 %s99, %s103
      %p105 = scmp.eq.s32.totalorder %s104, 0
      %s107 = sadd.s32 %s106, 1
      %s108 = scalar_select %p105, %s106, %s107
      %p111 = pneg %p105
      %p112 = scmp.eq.s32.totalorder %s21, 3
      %p113 = por %p111, %p112
      %p114 = scmp.ne.s32.totalorder %s106, %s109
      %p115 = scmp.eq.s32.totalorder %s21, 0
      %p116 = por %p114, %p115
      %p117 = scmp.ne.s32.totalorder %s106, %s109
      %p118 = scmp.eq.s32.totalorder %s26, 3
      %p119 = por %p117, %p118
      %p120 = scmp.ne.s32.totalorder %s109, %s110
      %p121 = scmp.eq.s32.totalorder %s26, 0
      %p122 = por %p120, %p121
      %p123 = scmp.ne.s32.totalorder %s109, %s110
      %p124 = scmp.eq.s32.totalorder %s27, 3
      %p125 = por %p123, %p124
      %p127 = scmp.ne.s32.totalorder %s110, %s126
      %p128 = scmp.eq.s32.totalorder %s27, 0
      %p129 = por %p127, %p128
      %s130 = smul.u32 %s28, 2
      %s131 = sadd.s32 %s130, %s29
      %p132 = scmp.lt.s32.totalorder %s131, 2
      %s133 = scalar_select %p132, %s131, 2
      %s134 = smul.u32 %s40, 2
      %s135 = sadd.s32 %s134, %s36
      %p136 = scmp.lt.s32.totalorder %s135, 2
      %s137 = scalar_select %p136, %s135, 2
      %s138 = ssub.s32 %s133, %s137
      %p139 = scmp.eq.s32.totalorder %s138, 0
      %s141 = sadd.s32 %s140, 1
      %s142 = scalar_select %p139, %s140, %s141
      %p145 = pneg %p139
      %p146 = scmp.eq.s32.totalorder %s21, 3
      %p147 = por %p145, %p146
      %p148 = scmp.ne.s32.totalorder %s140, %s143
      %p149 = scmp.eq.s32.totalorder %s21, 0
      %p150 = por %p148, %p149
      %p151 = scmp.ne.s32.totalorder %s140, %s143
      %p152 = scmp.eq.s32.totalorder %s26, 3
      %p153 = por %p151, %p152
      %p154 = scmp.ne.s32.totalorder %s143, %s144
      %p155 = scmp.eq.s32.totalorder %s26, 0
      %p156 = por %p154, %p155
      %p157 = scmp.ne.s32.totalorder %s143, %s144
      %p158 = scmp.eq.s32.totalorder %s27, 3
      %p159 = por %p157, %p158
      %p161 = scmp.ne.s32.totalorder %s144, %s160
      %p162 = scmp.eq.s32.totalorder %s27, 0
      %p163 = por %p161, %p162
      %s164 = smul.u32 %s28, 2
      %s165 = sadd.s32 %s164, %s29
      %p166 = scmp.lt.s32.totalorder %s165, 2
      %s167 = scalar_select %p166, %s165, 2
      %s168 = smul.u32 %s40, 2
      %s169 = sadd.s32 %s168, %s36
      %p170 = scmp.lt.s32.totalorder %s169, 2
      %s171 = scalar_select %p170, %s169, 2
      %s172 = ssub.s32 %s167, %s171
      %p173 = scmp.eq.s32.totalorder %s172, 0
      %s175 = sadd.s32 %s174, 1
      %s176 = scalar_select %p173, %s174, %s175
      %p179 = pneg %p173
      %p180 = scmp.eq.s32.totalorder %s21, 3
      %p181 = por %p179, %p180
      %p182 = scmp.ne.s32.totalorder %s174, %s177
      %p183 = scmp.eq.s32.totalorder %s21, 0
      %p184 = por %p182, %p183
      %p185 = scmp.ne.s32.totalorder %s174, %s177
      %p186 = scmp.eq.s32.totalorder %s26, 3
      %p187 = por %p185, %p186
      %p188 = scmp.ne.s32.totalorder %s177, %s178
      %p189 = scmp.eq.s32.totalorder %s26, 0
      %p190 = por %p188, %p189
      %p191 = scmp.ne.s32.totalorder %s177, %s178
      %p192 = scmp.eq.s32.totalorder %s27, 3
      %p193 = por %p191, %p192
      %p195 = scmp.ne.s32.totalorder %s178, %s194
      %p196 = scmp.eq.s32.totalorder %s27, 0
      %p197 = por %p195, %p196
      %s198 = ssub.s32 %s28, %s40
      %p199 = scmp.eq.s32.totalorder %s198, 0
      %s201 = sadd.s32 %s200, 1
      %s202 = scalar_select %p199, %s200, %s201
      %p205 = pneg %p199
      %p206 = scmp.eq.s32.totalorder %s21, 3
      %p207 = por %p205, %p206
      %p208 = scmp.ne.s32.totalorder %s200, %s203
      %p209 = scmp.eq.s32.totalorder %s21, 0
      %p210 = por %p208, %p209
      %p211 = scmp.ne.s32.totalorder %s200, %s203
      %p212 = scmp.eq.s32.totalorder %s26, 3
      %p213 = por %p211, %p212
      %p214 = scmp.ne.s32.totalorder %s203, %s204
      %p215 = scmp.eq.s32.totalorder %s26, 0
      %p216 = por %p214, %p215
      %p217 = scmp.ne.s32.totalorder %s203, %s204
      %p218 = scmp.eq.s32.totalorder %s27, 3
      %p219 = por %p217, %p218
      %p221 = scmp.ne.s32.totalorder %s204, %s220
      %p222 = scmp.eq.s32.totalorder %s27, 0
      %p223 = por %p221, %p222
      %p224 = scmp.le.s32.totalorder 1, %s21
      %p225 = scmp.lt.s32.totalorder %s21, 5
      %p226 = pnand %p224, %p225
      %p227 = pneg %p226
      // Predicated region
      $region9: #{tpu_custom_call.1} parent=5 // pred_check
        _
      $region10: #{tpu_custom_call.1} parent=5 // pred_check_branch
        %229 = sbr.rel (%p226) target = $region12
      $region11: #{tpu_custom_call.1} parent=5 // pred_region
        %s230 = ssub.s32 %s21, 1
        // Predicated region
        $region13: #{tpu_custom_call.1} parent=11 // pred_check
          %p231 = pneg %p54
        $region14: #{tpu_custom_call.1} parent=11 // pred_check_branch
          %233 = sbr.rel (%p231) target = $region16
        $region15: #{tpu_custom_call.1} parent=11 // pred_region
          %235 = vsyncadd [#allocation6], 0
          %s237 = sshll.u32 %s0, 4
          %s238 = int_to_ptr.vmem [resolvable:$true] %s237
          %240 = dma.vmem_to_smem %s238, 16, [#allocation3], [#allocation6]
        $region16: #{tpu_custom_call.1} parent=11 // pred_fallthru
          _
      $region12: #{tpu_custom_call.1} parent=5 // pred_fallthru
        _
      %p241 = scmp.lt.s32.totalorder %s21, 4
      // Predicated region
      $region17: #{tpu_custom_call.1} parent=5 // pred_check
        %p242 = pneg %p241
      $region18: #{tpu_custom_call.1} parent=5 // pred_check_branch
        %244 = sbr.rel (%p242) target = $region20
      $region19: #{tpu_custom_call.1} parent=5 // pred_region
        // Predicated region
        $region21: #{tpu_custom_call.1} parent=19 // pred_check
          %p245 = pneg %p82
        $region22: #{tpu_custom_call.1} parent=19 // pred_check_branch
          %247 = sbr.rel (%p245) target = $region24
        $region23: #{tpu_custom_call.1} parent=19 // pred_region
          %s248 = smul.u32 %s28, 2
          %s249 = sadd.s32 %s248, %s29
          %p250 = scmp.lt.s32.totalorder %s249, 2
          %s251 = scalar_select %p250, %s249, 2
          %p252 = scmp.lt.s32.totalorder %s251, 2
          %s253 = scalar_select %p252, %s251, 2
          %s254 = smul.addr %s253, 8
          %s255 = scalar_lea.vmem %s1, %s254
          %s256 = smul.u32 %s28, 2
          %s257 = sadd.s32 %s256, %s29
          %p258 = scmp.lt.s32.totalorder %s257, 2
          %s259 = scalar_select %p258, %s257, 2
        $region24: #{tpu_custom_call.1} parent=19 // pred_fallthru
          _
        // Predicated region
        $region25: #{tpu_custom_call.1} parent=19 // pred_check
          %p260 = pneg %p116
        $region26: #{tpu_custom_call.1} parent=19 // pred_check_branch
          %262 = sbr.rel (%p260) target = $region28
        $region27: #{tpu_custom_call.1} parent=19 // pred_region
          %s263 = smul.u32 %s28, 2
          %s264 = sadd.s32 %s263, %s29
          %p265 = scmp.lt.s32.totalorder %s264, 2
          %s266 = scalar_select %p265, %s264, 2
          %p267 = scmp.lt.s32.totalorder %s266, 2
          %s268 = scalar_select %p267, %s266, 2
          %s269 = smul.addr %s268, 8
          %s270 = scalar_lea.vmem %s2, %s269
          %s271 = smul.u32 %s28, 2
          %s272 = sadd.s32 %s271, %s29
          %p273 = scmp.lt.s32.totalorder %s272, 2
          %s274 = scalar_select %p273, %s272, 2
        $region28: #{tpu_custom_call.1} parent=19 // pred_fallthru
          _
        // Predicated region
        $region29: #{tpu_custom_call.1} parent=19 // pred_check
          %p275 = pneg %p150
        $region30: #{tpu_custom_call.1} parent=19 // pred_check_branch
          %277 = sbr.rel (%p275) target = $region32
        $region31: #{tpu_custom_call.1} parent=19 // pred_region
          %s278 = sand.u32 %s140, 1
          %s279 = scalar_lea.sflag [#allocation4], %s278
          %s280 = sand.u32 %s140, 1
          %s281 = smul.addr %s280, 8
          %s282 = scalar_lea.vmem [#allocation7], %s281
          %s283 = smul.u32 %s28, 2
          %s284 = sadd.s32 %s283, %s29
          %p285 = scmp.lt.s32.totalorder %s284, 2
          %s286 = scalar_select %p285, %s284, 2
          %288 = vsyncadd %s279, 0
          %s289 = smul.addr %s286, 8
          %s290 = scalar_lea.hbm %s3, %s289
          %s292 = sshll.u32 %s290, 4
          %s293 = int_to_ptr.hbm [resolvable:$true] %s292
          %s294 = sshll.u32 %s282, 4
          %s295 = int_to_ptr.vmem [resolvable:$true] %s294
          %297 = dma.hbm_to_vmem [thread:$0]  %s293, 128, %s295, %s279
        $region32: #{tpu_custom_call.1} parent=19 // pred_fallthru
          _
        // Predicated region
        $region33: #{tpu_custom_call.1} parent=19 // pred_check
          %p298 = pneg %p184
        $region34: #{tpu_custom_call.1} parent=19 // pred_check_branch
          %300 = sbr.rel (%p298) target = $region36
        $region35: #{tpu_custom_call.1} parent=19 // pred_region
          %s301 = sand.u32 %s174, 1
          %s302 = scalar_lea.sflag [#allocation9], %s301
          %s303 = sand.u32 %s174, 1
          %s304 = smul.addr %s303, 8
          %s305 = scalar_lea.vmem [#allocation8], %s304
          %s306 = smul.u32 %s28, 2
          %s307 = sadd.s32 %s306, %s29
          %p308 = scmp.lt.s32.totalorder %s307, 2
          %s309 = scalar_select %p308, %s307, 2
          %311 = vsyncadd %s302, 0
          %s312 = smul.addr %s309, 8
          %s313 = scalar_lea.hbm %s4, %s312
          %s315 = sshll.u32 %s313, 4
          %s316 = int_to_ptr.hbm [resolvable:$true] %s315
          %s317 = sshll.u32 %s305, 4
          %s318 = int_to_ptr.vmem [resolvable:$true] %s317
          %320 = dma.hbm_to_vmem [thread:$0]  %s316, 128, %s318, %s302
        $region36: #{tpu_custom_call.1} parent=19 // pred_fallthru
          _
      $region20: #{tpu_custom_call.1} parent=5 // pred_fallthru
        _
      %p321 = scmp.le.s32.totalorder 1, %s21
      %p322 = scmp.lt.s32.totalorder %s21, 5
      %p323 = pnand %p321, %p322
      %p324 = pneg %p323
      // Predicated region
      $region37: #{tpu_custom_call.1} parent=5 // pred_check
        _
      $region38: #{tpu_custom_call.1} parent=5 // pred_check_branch
        %326 = sbr.rel (%p323) target = $region40
      $region39: #{tpu_custom_call.1} parent=5 // pred_region
        %s327 = ssub.s32 %s21, 1
        // Predicated region
        $region41: #{tpu_custom_call.1} parent=39 // pred_check
          %p328 = pneg %p54
        $region42: #{tpu_custom_call.1} parent=39 // pred_check_branch
          %330 = sbr.rel (%p328) target = $region44
        $region43: #{tpu_custom_call.1} parent=39 // pred_region
          %332 = dma.done [#allocation6], 16
        $region44: #{tpu_custom_call.1} parent=39 // pred_fallthru
          _
        %s333 = sand.u32 %s143, 1
        %s334 = scalar_lea.sflag [#allocation4], %s333
        %s335 = sand.u32 %s143, 1
        %s336 = smul.addr %s335, 8
        %s337 = scalar_lea.vmem [#allocation7], %s336
        // Predicated region
        $region45: #{tpu_custom_call.1} parent=39 // pred_check
          %p338 = pneg %p156
        $region46: #{tpu_custom_call.1} parent=39 // pred_check_branch
          %340 = sbr.rel (%p338) target = $region48
        $region47: #{tpu_custom_call.1} parent=39 // pred_region
          %342 = dma.done %s334, 128
        $region48: #{tpu_custom_call.1} parent=39 // pred_fallthru
          _
        %s343 = sand.u32 %s177, 1
        %s344 = scalar_lea.sflag [#allocation9], %s343
        %s345 = sand.u32 %s177, 1
        %s346 = smul.addr %s345, 8
        %s347 = scalar_lea.vmem [#allocation8], %s346
        // Predicated region
        $region49: #{tpu_custom_call.1} parent=39 // pred_check
          %p348 = pneg %p190
        $region50: #{tpu_custom_call.1} parent=39 // pred_check_branch
          %350 = sbr.rel (%p348) target = $region52
        $region51: #{tpu_custom_call.1} parent=39 // pred_region
          %352 = dma.done %s344, 128
        $region52: #{tpu_custom_call.1} parent=39 // pred_fallthru
          _
        %353 = sfence
        %p354 = pneg %p54
        %p355 = pneg %p51
        %s356 = smul.u32 %s30, 2
        %s357 = sadd.s32 %s356, %s31
        %p358 = scmp.lt.s32.totalorder %s357, 2
        %s359 = scalar_select %p358, %s357, 2
        %p360 = scmp.lt.s32.totalorder %s359, 2
        %s361 = scalar_select %p360, %s359, 2
        %s362 = smul.addr %s361, 8
        %s363 = scalar_lea.vmem %s1, %s362
        %p364 = pneg %p88
        %p365 = pneg %p85
        %s366 = smul.u32 %s30, 2
        %s367 = sadd.s32 %s366, %s31
        %p368 = scmp.lt.s32.totalorder %s367, 2
        %s369 = scalar_select %p368, %s367, 2
        %p370 = scmp.lt.s32.totalorder %s369, 2
        %s371 = scalar_select %p370, %s369, 2
        %s372 = smul.addr %s371, 8
        %s373 = scalar_lea.vmem %s2, %s372
        %p374 = pneg %p122
        %p375 = pneg %p119
        %s376 = sand.u32 %s143, 1
        %s377 = scalar_lea.sflag [#allocation4], %s376
        %s378 = sand.u32 %s143, 1
        %s379 = smul.addr %s378, 8
        %s380 = scalar_lea.vmem [#allocation7], %s379
        %p381 = pneg %p156
        %p382 = pneg %p153
        %s383 = sand.u32 %s177, 1
        %s384 = scalar_lea.sflag [#allocation9], %s383
        %s385 = sand.u32 %s177, 1
        %s386 = smul.addr %s385, 8
        %s387 = scalar_lea.vmem [#allocation8], %s386
        %p388 = pneg %p190
        %p389 = pneg %p187
        %p390 = pneg %p216
        %p391 = pneg %p213
        %s392 = sand.u32 %s203, 1
        %s393 = scalar_lea.sflag [#allocation5], %s392
        %s394 = sand.u32 %s203, 1
        %s395 = smul.addr %s394, 8
        %s396 = scalar_lea.vmem [#allocation10], %s395
        %s397 = smul.u32 %s30, 2
        %s398 = sadd.s32 %s397, %s31
        %p399 = scmp.lt.s32.totalorder %s398, 2
        %s400 = scalar_select %p399, %s398, 2
        %p401 = scmp.lt.s32.totalorder %s400, 2
        %s402 = scalar_select %p401, %s400, 2
        %s403 = smul.addr %s402, 8
        %s404 = scalar_lea.vmem %s1, %s403
        %s405 = smul.u32 %s30, 2
        %s406 = sadd.s32 %s405, %s31
        %p407 = scmp.lt.s32.totalorder %s406, 2
        %s408 = scalar_select %p407, %s406, 2
        %s409 = smul.u32 %s30, 2
        %s410 = sadd.s32 %s409, %s31
        %p411 = scmp.lt.s32.totalorder %s410, 2
        %s412 = scalar_select %p411, %s410, 2
        %p413 = scmp.lt.s32.totalorder %s412, 2
        %s414 = scalar_select %p413, %s412, 2
        %s415 = smul.addr %s414, 8
        %s416 = scalar_lea.vmem %s2, %s415
        %s417 = smul.u32 %s30, 2
        %s418 = sadd.s32 %s417, %s31
        %p419 = scmp.lt.s32.totalorder %s418, 2
        %s420 = scalar_select %p419, %s418, 2
        %s421 = smul.u32 %s30, 2
        %s422 = sadd.s32 %s421, %s31
        %p423 = scmp.lt.s32.totalorder %s422, 2
        %s424 = scalar_select %p423, %s422, 2
        %s425 = smul.u32 %s30, 2
        %s426 = sadd.s32 %s425, %s31
        %p427 = scmp.lt.s32.totalorder %s426, 2
        %s428 = scalar_select %p427, %s426, 2
        %p429 = scmp.eq.s32.totalorder %s31, 0
        // Predicated region
        $region53: #{tpu_custom_call.1} parent=39 // pred_check
          %p430 = pneg %p429
        $region54: #{tpu_custom_call.1} parent=39 // pred_check_branch
          %432 = sbr.rel (%p430) target = $region56
        $region55: #{tpu_custom_call.1} parent=39 // pred_region
          %vm433 = vcmask 7168
          %434 = vst.msk [vmem:[#allocation2] sm:$0xff] %vm433, 0.0
        $region56: #{tpu_custom_call.1} parent=39 // pred_fallthru
          _
        %v435 = vld [vmem:[%s416] sm:$0xff]
        %v436 = vlaneseq
        %v437 = vshrl.u32 %v436, 7
        %s438 = smul.u32 %s30, 2
        %s439 = sadd.s32 %s438, %s31
        %s440 = smul.u32 %s439, 8
        %v441 = vstv %s440
        %v442 = vadd.s32 %v437, %v441
        %vm443 = vcmp.lt.s32.totalorder %v442, 20
        %v444 = vmul.f32 %v435, %v435
        %vm445 = vcmask 261120
        %v446 = vsel %vm445, %v444, 0.0
        %447 = vadd.xlane.f32.xlu0 %v446
        %v448 = vpop.xlane.xlu0 %447
        %v449 = vmax.f32 %v448, 1e-16
        %v450 = vrsqrt.pop %v449
        %v451 = vmul.f32 %v450, %v449
        %v452 = vmul.f32 %v451, %v450
        %v453 = vmul.f32 0.5, %v452
        %v454 = vsub.f32 1.5, %v453
        %v455 = vmul.f32 %v450, %v454
        %vm456 = vweird.f32 %v449
        %vm457 = vweird.f32 %v450
        %vm458 = vmor %vm456, %vm457
        %v459 = vsel %vm458, %v450, %v455
        %v460 = vld [vmem:[%s337] sm:$0xff]
        %v461 = vmul.f32 %v435, %v460
        %v462 = vsel %vm445, %v461, 0.0
        %463 = vadd.xlane.f32.xlu0 %v462
        %v464 = vpop.xlane.xlu0 %463
        %v465 = vmul.f32 %v460, %v460
        %v466 = vsel %vm445, %v465, 0.0
        %467 = vadd.xlane.f32.xlu0 %v466
        %v468 = vpop.xlane.xlu0 %467
        %v469 = vmul.f32 %v464, %v459
        %v470 = vmax.f32 %v468, 1e-16
        %v471 = vrsqrt.pop %v470
        %v472 = vmul.f32 %v471, %v470
        %v473 = vmul.f32 %v472, %v471
        %v474 = vmul.f32 0.5, %v473
        %v475 = vsub.f32 1.5, %v474
        %v476 = vmul.f32 %v471, %v475
        %vm477 = vweird.f32 %v470
        %vm478 = vweird.f32 %v471
        %vm479 = vmor %vm477, %vm478
        %v480 = vsel %vm479, %v471, %v476
        %v481 = vmul.f32 %v469, %v480
        %v482 = vld [vmem:[%s347] sm:$0xff]
        %v483 = vmul.f32 %v435, %v482
        %v484 = vsel %vm445, %v483, 0.0
        %485 = vadd.xlane.f32.xlu0 %v484
        %v486 = vpop.xlane.xlu0 %485
        %v487 = vmul.f32 %v482, %v482
        %v488 = vsel %vm445, %v487, 0.0
        %489 = vadd.xlane.f32.xlu0 %v488
        %v490 = vpop.xlane.xlu0 %489
        %v491 = vmul.f32 %v486, %v459
        %v492 = vmax.f32 %v490, 1e-16
        %v493 = vrsqrt.pop %v492
        %v494 = vmul.f32 %v493, %v492
        %v495 = vmul.f32 %v494, %v493
        %v496 = vmul.f32 0.5, %v495
        %v497 = vsub.f32 1.5, %v496
        %v498 = vmul.f32 %v493, %v497
        %vm499 = vweird.f32 %v492
        %vm500 = vweird.f32 %v493
        %vm501 = vmor %vm499, %vm500
        %v502 = vsel %vm501, %v493, %v498
        %v503 = vmul.f32 %v491, %v502
        %v504 = vsel %vm445, %v435, -inf
        %505 = vmax.xlane.f32.xlu0 %v504
        %v506 = vpop.xlane.xlu0 %505
        %v507 = vsub.f32 %v435, %v506
        %v508 = vmul.f32 %v507, 1.442695
        %v509 = vpow.pop %v508
        %v510 = vsel %vm445, %v509, 0.0
        %511 = vadd.xlane.f32.xlu0 %v510
        %v512 = vpop.xlane.xlu0 %511
        %v513 = vlog2.pop %v512
        %v514 = vmul.f32 %v513, 0.6931472
        %v515 = vadd.f32 %v514, %v506
        %v516 = vlaneseq
        %v517 = vand.u32 %v516, 127
        %v518 = vld [vmem:[%s404] sm:$0xff]
        %519 = vset.pattern.permute.xlu0 0
        %520 = vperm.xlu0 %519, %v518
        %v521 = vpop.permute.xlu0 %520
        %vm522 = vcmp.eq.s32.totalorder %v517, %v521
        %v523 = vsel %vm522, 1, 0
        %v524 = vcvt.s32.f32 %v523
        %v525 = vmul.f32 %v435, %v524
        %v526 = vsel %vm445, %v525, 0.0
        %527 = vadd.xlane.f32.xlu0 %v526
        %v528 = vpop.xlane.xlu0 %527
        %s529 = sld [smem:[#allocation3]]
        %v530 = vstv %s529
        %v531 = vmul.f32 %v530, %v481
        %s532 = sld [smem:[#allocation3 + $0x1]]
        %v533 = vstv %s532
        %v534 = vmul.f32 %v533, %v503
        %v535 = vsub.f32 %v531, %v534
        %s536 = sld [smem:[#allocation3 + $0x2]]
        %v537 = vsub.f32 %v515, %v528
        %v538 = vstv %s536
        %v539 = vmul.f32 %v538, %v537
        %v540 = vadd.f32 %v535, %v539
        %v541 = vld [vmem:[#allocation2] sm:$0xff]
        %v542 = vsel %vm443, %v540, 0.0
        %v543 = vadd.f32 %v541, %v542
        %vm544 = vcmask 7168
        %545 = vst.msk [vmem:[#allocation2] sm:$0xff] %vm544, %v543
        %p546 = scmp.eq.s32.totalorder %s31, 1
        // Predicated region
        $region57: #{tpu_custom_call.1} parent=39 // pred_check
          %p547 = pneg %p546
        $region58: #{tpu_custom_call.1} parent=39 // pred_check_branch
          %549 = sbr.rel (%p547) target = $region60
        $region59: #{tpu_custom_call.1} parent=39 // pred_region
          %v550 = vld [vmem:[#allocation2] sm:$0xff]
          %v551 = vsel %vm544, %v550, 0.0
          %552 = vadd.xlane.f32.xlu0 %v551
          %v553 = vpop.xlane.xlu0 %552
          %v554 = vrot.slane %v553, 4
          %v555 = vadd.f32 %v553, %v554
          %v556 = vrot.slane %v555, 2
          %v557 = vadd.f32 %v555, %v556
          %v558 = vrot.slane %v557, 1
          %v559 = vadd.f32 %v557, %v558
          %s560 = vtos %v559
          %v561 = vstv %s560
          %562 = vst [vmem:[%s396] sm:$0xff] %v561
        $region60: #{tpu_custom_call.1} parent=39 // pred_fallthru
          _
        %s563 = sand.u32 %s203, 1
        %s564 = scalar_lea.sflag [#allocation5], %s563
        %s565 = sand.u32 %s203, 1
        %s566 = smul.addr %s565, 8
        %s567 = scalar_lea.vmem [#allocation10], %s566
        // Predicated region
        $region61: #{tpu_custom_call.1} parent=39 // pred_check
          %p568 = pneg %p213
        $region62: #{tpu_custom_call.1} parent=39 // pred_check_branch
          %570 = sbr.rel (%p568) target = $region64
        $region63: #{tpu_custom_call.1} parent=39 // pred_region
          %572 = vsyncadd %s564, 0
          %s573 = smul.addr %s30, 8
          %s574 = scalar_lea.hbm %s5, %s573
          %s576 = sshll.u32 %s567, 4
          %s577 = int_to_ptr.vmem [resolvable:$true] %s576
          %s578 = sshll.u32 %s574, 4
          %s579 = int_to_ptr.hbm [resolvable:$true] %s578
          %581 = dma.vmem_to_hbm [thread:$0]  %s577, 128, %s579, %s564
        $region64: #{tpu_custom_call.1} parent=39 // pred_fallthru
          _
      $region40: #{tpu_custom_call.1} parent=5 // pred_fallthru
        _
      %p582 = scmp.le.s32.totalorder 2, %s21
      // Predicated region
      $region65: #{tpu_custom_call.1} parent=5 // pred_check
        %p583 = pneg %p582
      $region66: #{tpu_custom_call.1} parent=5 // pred_check_branch
        %585 = sbr.rel (%p583) target = $region68
      $region67: #{tpu_custom_call.1} parent=5 // pred_region
        %s586 = ssub.s32 %s21, 2
        // Predicated region
        $region69: #{tpu_custom_call.1} parent=67 // pred_check
          %p587 = pneg %p219
        $region70: #{tpu_custom_call.1} parent=67 // pred_check_branch
          %589 = sbr.rel (%p587) target = $region72
        $region71: #{tpu_custom_call.1} parent=67 // pred_region
          %s590 = sand.u32 %s204, 1
          %s591 = scalar_lea.sflag [#allocation5], %s590
          %s592 = sand.u32 %s204, 1
          %s593 = smul.addr %s592, 8
          %s594 = scalar_lea.vmem [#allocation10], %s593
          %596 = dma.done %s591, 128
        $region72: #{tpu_custom_call.1} parent=67 // pred_fallthru
          _
      $region68: #{tpu_custom_call.1} parent=5 // pred_fallthru
        _
    $region6: #{tpu_custom_call.1} parent=1 // loop_footer
      %s25 = sadd.s32 1, %s21
    $region7: #{tpu_custom_call.1} parent=1 // loop_footer_branch
      %20 = sbr.rel target = $region3
    $region8: #{tpu_custom_call.1} parent=1 // loop_exit
      _
    %597 = vsyncpa [#allocation4], 1
    %s598 = scalar_lea.sflag [#allocation4], 1
    %599 = vsyncpa %s598, 1
    %600 = vsyncpa [#allocation9], 1
    %s601 = scalar_lea.sflag [#allocation9], 1
    %602 = vsyncpa %s601, 1
    %603 = vsyncpa [#allocation5], 1
    %s604 = scalar_lea.sflag [#allocation5], 1
    %605 = vsyncpa %s604, 1
    %606 = vsyncpa [#allocation6], 1
    %s607 = scalar_lea.sflag [#allocation6], 1
    %608 = vsyncpa %s607, 1

</llo_original>
